<compile_context>
chip_gen: v5e
topology: v5e:2x2
jax: 0.10.0
libtpu: 0.0.40
codegen_flags: <defaults>
</compile_context>

<pallas_src>
import jax
import jax.numpy as jnp
from jax.experimental import pallas as pl
from jax.experimental.pallas import tpu as pltpu


def _round_up(n, m):
    return ((n + m - 1) // m) * m


def _head_kernel(x_ref, w1_ref, b1_ref, w2t_ref, b2_ref, o_ref):
    # x: (TB, D)  w1: (D, H)  b1: (1, H)  w2t: (1, H)  b2: (1, 1) in SMEM
    x = x_ref[...]
    h = jnp.dot(x, w1_ref[...], preferred_element_type=jnp.float32) + b1_ref[...]
    h = jnp.maximum(h, 0.0)                      # ReLU(inplace=True) == ReLU
    # Second projection (H -> 1): VPU multiply + lane reduce; keeps a dependent
    # N=1 MXU matmul (and its result-FIFO drain) off the critical path.
    y = jnp.sum(h * w2t_ref[...], axis=-1, keepdims=True) + b2_ref[0, 0]
    o_ref[...] = y.astype(o_ref.dtype)


def head_forward(x, w1, b1, w2, b2, *, tile_b=1024):
    """y = ReLU(x @ w1 + b1) @ w2 + b2 over the last dim of x.

    x: (..., D); w1: (D, H); b1: (1, H); w2: (H, 1); b2: (1, 1) -> (..., 1)
    """
    orig_shape = x.shape
    D = orig_shape[-1]
    H = w1.shape[1]
    x2 = x.reshape(-1, D)                        # free flatten of leading dims
    B = x2.shape[0]

    # Batch tile: multiple of 8 (sublane).  Cap so double-buffered x tiles stay
    # well inside v7x's 64 MiB VMEM even for larger d_model.
    tb = min(_round_up(int(tile_b), 8), _round_up(B, 8))
    max_tb_for_vmem = max(8, (((24 << 20) // (2 * D * 4)) // 8) * 8)
    tb = max(8, min(tb, max_tb_for_vmem))

    w2t = w2.reshape(1, H)                       # (H, 1) -> (1, H) for mul+reduce
    b2s = b2.reshape(1, 1)

    # VMEM budget: double-buffered x/out tiles + resident weights + headroom.
    vmem_needed = 2 * (tb * D + tb + D * H + 3 * H) * 4
    vmem_limit = int(min(max(vmem_needed + (4 << 20), 16 << 20), 64 << 20))

    out = pl.pallas_call(
        _head_kernel,
        out_shape=jax.ShapeDtypeStruct((B, 1), x2.dtype),
        grid=(pl.cdiv(B, tb),),
        in_specs=[
            pl.BlockSpec((tb, D), lambda i: (i, 0)),            # x: streamed
            pl.BlockSpec((D, H), lambda i: (0, 0)),             # w1: resident
            pl.BlockSpec((1, H), lambda i: (0, 0)),             # b1: resident
            pl.BlockSpec((1, H), lambda i: (0, 0)),             # w2^T: resident
            pl.BlockSpec(memory_space=pltpu.MemorySpace.SMEM),  # b2 scalar
        ],
        out_specs=pl.BlockSpec((tb, 1), lambda i: (i, 0)),
        compiler_params=pltpu.CompilerParams(
            dimension_semantics=("parallel",),   # shard batch tiles over TCs
            vmem_limit_bytes=vmem_limit,
        ),
    )(x2, w1, b1, w2t, b2s)
    return out.reshape(orig_shape[:-1] + (1,))


def init_head_params(key, d_model=256, hidden=32):
    """Deterministic init mirroring nn.Linear's U(-1/sqrt(fan_in), 1/sqrt(fan_in))."""
    k1, k2, k3, k4 = jax.random.split(key, 4)
    bound1 = 1.0 / (d_model ** 0.5)
    bound2 = 1.0 / (hidden ** 0.5)
    w1 = jax.random.uniform(k1, (d_model, hidden), jnp.float32, -bound1, bound1)
    b1 = jax.random.uniform(k2, (1, hidden), jnp.float32, -bound1, bound1)
    w2 = jax.random.uniform(k3, (hidden, 1), jnp.float32, -bound2, bound2)
    b2 = jax.random.uniform(k4, (1, 1), jnp.float32, -bound2, bound2)
    return w1, b1, w2, b2


def _reference(x, w1, b1, w2, b2):
    return jnp.maximum(x @ w1 + b1, 0.0) @ w2 + b2


if __name__ == "__main__":
    d_model = 256
    key = jax.random.PRNGKey(0)
    kx, kp, kx2 = jax.random.split(key, 3)
    w1, b1, w2, b2 = init_head_params(kp, d_model=d_model, hidden=32)

    # Case 1: small batch (single tile).
    batch = 8
    x = jax.random.normal(kx, (batch, d_model), dtype=jnp.float32)
    y = jax.block_until_ready(head_forward(x, w1, b1, w2, b2))
    ref = _reference(x, w1, b1, w2, b2)
    assert y.shape == (batch, 1)
    assert jnp.allclose(y, ref, atol=1e-5, rtol=1e-5)

    # Case 2: ragged batch + multi-tile grid (exercises the partial final block
    # without an explicit pad/copy of x).
    batch2 = 200
    x2 = jax.random.normal(kx2, (batch2, d_model), dtype=jnp.float32)
    y2 = jax.block_until_ready(head_forward(x2, w1, b1, w2, b2, tile_b=64))
    ref2 = _reference(x2, w1, b1, w2, b2)
    assert y2.shape == (batch2, 1)
    assert jnp.allclose(y2, ref2, atol=1e-5, rtol=1e-5)

    # Case 3: leading dims (B, T, D), as nn.Linear applies over the last dim.
    x3 = jax.random.normal(kx, (2, 16, d_model), dtype=jnp.float32)
    y3 = jax.block_until_ready(head_forward(x3, w1, b1, w2, b2, tile_b=16))
    ref3 = _reference(x3.reshape(-1, d_model), w1, b1, w2, b2).reshape(2, 16, 1)
    assert y3.shape == (2, 16, 1)
    assert jnp.allclose(y3, ref3, atol=1e-5, rtol=1e-5)

    # TODO(synk): optional bf16 x/w1 path (halves HBM traffic) needs a relaxed tolerance.
    print("KERNEL_OK")
</pallas_src>

<mosaic_0001>
module attributes {stable_mosaic.version = 11 : i64} {
  func.func @_head_kernel(%arg0: i32, %arg1: memref<8x256xf32, #tpu.memory_space<vmem>>, %arg2: memref<256x32xf32, #tpu.memory_space<vmem>>, %arg3: memref<1x32xf32, #tpu.memory_space<vmem>>, %arg4: memref<1x32xf32, #tpu.memory_space<vmem>>, %arg5: memref<1x1xf32, #tpu.memory_space<smem>>, %arg6: memref<8x1xf32, #tpu.memory_space<vmem>>) attributes {dimension_semantics = [#tpu.dimension_semantics<parallel>], iteration_bounds = array<i64: 1>, scalar_prefetch = 0 : i64, scratch_operands = 0 : i64, tpu.core_type = #tpu.core_type<tc>, window_params = [{transform_indices = @transform_0, window_bounds = array<i64: 8, 256>}, {pipeline_mode = #tpu.pipeline_mode<synchronous>, transform_indices = @transform_1, window_bounds = array<i64: 256, 32>}, {pipeline_mode = #tpu.pipeline_mode<synchronous>, transform_indices = @transform_2, window_bounds = array<i64: 1, 32>}, {pipeline_mode = #tpu.pipeline_mode<synchronous>, transform_indices = @transform_3, window_bounds = array<i64: 1, 32>}, {transform_indices = @transform_4, window_bounds = array<i64: 1, 1>}, {transform_indices = @transform_5, window_bounds = array<i64: 8, 1>}]} {
    %c0 = arith.constant 0 : index
    %c0_0 = arith.constant 0 : index
    %0 = vector.load %arg1[%c0, %c0_0] : memref<8x256xf32, #tpu.memory_space<vmem>>, vector<8x256xf32>
    %c0_1 = arith.constant 0 : index
    %c0_2 = arith.constant 0 : index
    %1 = vector.load %arg2[%c0_1, %c0_2] : memref<256x32xf32, #tpu.memory_space<vmem>>, vector<256x32xf32>
    %cst = arith.constant dense<0.000000e+00> : vector<8x32xf32>
    %2 = tpu.matmul %0, %1, %cst {dimension_numbers = #tpu.dot_dimension_numbers<[1], [0], [0], [1], [0, 0, 1, 1], [], []>} : vector<8x256xf32>, vector<256x32xf32>, vector<8x32xf32> -> vector<8x32xf32>
    %c0_3 = arith.constant 0 : index
    %c0_4 = arith.constant 0 : index
    %3 = vector.load %arg3[%c0_3, %c0_4] : memref<1x32xf32, #tpu.memory_space<vmem>>, vector<1x32xf32>
    %4 = vector.broadcast %3 : vector<1x32xf32> to vector<8x32xf32>
    %5 = arith.addf %2, %4 : vector<8x32xf32>
    %cst_5 = arith.constant 0.000000e+00 : f32
    %6 = vector.broadcast %cst_5 : f32 to vector<8x32xf32>
    %7 = arith.maximumf %5, %6 : vector<8x32xf32>
    %c0_6 = arith.constant 0 : index
    %c0_7 = arith.constant 0 : index
    %8 = vector.load %arg4[%c0_6, %c0_7] : memref<1x32xf32, #tpu.memory_space<vmem>>, vector<1x32xf32>
    %9 = vector.broadcast %8 : vector<1x32xf32> to vector<8x32xf32>
    %10 = arith.mulf %7, %9 : vector<8x32xf32>
    %cst_8 = arith.constant dense<0.000000e+00> : vector<8xf32>
    %11 = vector.multi_reduction <add>, %10, %cst_8 [1] : vector<8x32xf32> to vector<8xf32>
    %12 = vector.shape_cast %11 : vector<8xf32> to vector<8x1xf32>
    %c0_9 = arith.constant 0 : index
    %c0_10 = arith.constant 0 : index
    %13 = memref.load %arg5[%c0_9, %c0_10] : memref<1x1xf32, #tpu.memory_space<smem>>
    %14 = vector.broadcast %13 : f32 to vector<8x1xf32>
    %15 = arith.addf %12, %14 : vector<8x1xf32>
    %c0_11 = arith.constant 0 : index
    %c0_12 = arith.constant 0 : index
    %16 = vector.load %arg6[%c0_11, %c0_12] : memref<8x1xf32, #tpu.memory_space<vmem>>, vector<8x1xf32>
    tpu.vector_store %arg6[%c0_11, %c0_12], %15 {strides = array<i32>} : memref<8x1xf32, #tpu.memory_space<vmem>>, vector<8x1xf32>,
    return
  }
  func.func @transform_0(%arg0: i32) -> (i32, i32) {
    %c0_i32 = arith.constant 0 : i32
    %c0_i32_0 = arith.constant 0 : i32
    return %arg0, %c0_i32 : i32, i32
  }
  func.func @transform_1(%arg0: i32) -> (i32, i32) {
    %c0_i32 = arith.constant 0 : i32
    %c0_i32_0 = arith.constant 0 : i32
    %c0_i32_1 = arith.constant 0 : i32
    return %c0_i32, %c0_i32_0 : i32, i32
  }
  func.func @transform_2(%arg0: i32) -> (i32, i32) {
    %c0_i32 = arith.constant 0 : i32
    %c0_i32_0 = arith.constant 0 : i32
    %c0_i32_1 = arith.constant 0 : i32
    return %c0_i32, %c0_i32_0 : i32, i32
  }
  func.func @transform_3(%arg0: i32) -> (i32, i32) {
    %c0_i32 = arith.constant 0 : i32
    %c0_i32_0 = arith.constant 0 : i32
    %c0_i32_1 = arith.constant 0 : i32
    return %c0_i32, %c0_i32_0 : i32, i32
  }
  func.func @transform_4(%arg0: i32) -> (i32, i32) {
    %c0_i32 = arith.constant 0 : i32
    %c0_i32_0 = arith.constant 0 : i32
    %c0_i32_1 = arith.constant 0 : i32
    return %c0_i32, %c0_i32_0 : i32, i32
  }
  func.func @transform_5(%arg0: i32) -> (i32, i32) {
    %c0_i32 = arith.constant 0 : i32
    %c0_i32_0 = arith.constant 0 : i32
    return %arg0, %c0_i32 : i32, i32
  }
}

</mosaic_0001>

<llo_original>
// kernel: tpu_custom_call.1
$region0: #{tpu_custom_call.1}
  #allocation0 [shape = 'u32[]', space=smem, size = 0x4, offset = 0x4, fixed_abs, tag = 'smem constant byte address 0x4 - core index']
  #allocation1 [shape = 'u32[72,128]{1,0:T(1,128)}', space=vmem, size = 0x9000, scoped, tag = 'internal scratch']
  #allocation2 [shape = 'f32[1,1]{1,0:T(1,128)S(6)}', space=smem, size = 0x200, scoped, tag = 'scoped memory for tpu_custom_call.1']
  %s0 = inlined_call_operand.vmem [shape: f32[8,256], index: 0, kind: input, shape index: {}]
  %s1 = inlined_call_operand.vmem [shape: f32[256,32], index: 1, kind: input, shape index: {}]
  %s2 = inlined_call_operand.vmem [shape: f32[1,32], index: 2, kind: input, shape index: {}]
  %s3 = inlined_call_operand.vmem [shape: f32[1,32], index: 3, kind: input, shape index: {}]
  %s4 = inlined_call_operand.<no memory space> [shape: f32[1,1], index: 4, kind: input, shape index: {}]
  %s5 = inlined_call_operand.vmem [shape: f32[8,1], index: 5, kind: output, shape index: {}]
  %s6 = sld [smem:[#allocation0]]
  $region30: #{tpu_custom_call.1} parent=0
    _
  %s8 = ssub.s32 1, %s6
  %s9 = scalar_select 0, %s8, %s6
  %10 = sst [smem:[#allocation2]] %s4
  // Predicated region
  $region2: #{tpu_custom_call.1} parent=0 // pred_check
    _
  $region3: #{tpu_custom_call.1} parent=0 // pred_check_branch
    %12 = sbr.rel (0) target = $region5
  $region4: #{tpu_custom_call.1} parent=0 // pred_region
    _
  $region5: #{tpu_custom_call.1} parent=0 // pred_fallthru
    _
  // Predicated region
  $region6: #{tpu_custom_call.1} parent=0 // pred_check
    _
  $region7: #{tpu_custom_call.1} parent=0 // pred_check_branch
    %14 = sbr.rel (0) target = $region9
  $region8: #{tpu_custom_call.1} parent=0 // pred_region
    _
  $region9: #{tpu_custom_call.1} parent=0 // pred_fallthru
    _
  // Predicated region
  $region10: #{tpu_custom_call.1} parent=0 // pred_check
    _
  $region11: #{tpu_custom_call.1} parent=0 // pred_check_branch
    %16 = sbr.rel (0) target = $region13
  $region12: #{tpu_custom_call.1} parent=0 // pred_region
    _
  $region13: #{tpu_custom_call.1} parent=0 // pred_fallthru
    _
  // Predicated region
  $region14: #{tpu_custom_call.1} parent=0 // pred_check
    _
  $region15: #{tpu_custom_call.1} parent=0 // pred_check_branch
    %18 = sbr.rel (0) target = $region17
  $region16: #{tpu_custom_call.1} parent=0 // pred_region
    _
  $region17: #{tpu_custom_call.1} parent=0 // pred_fallthru
    _
  // Predicated region
  $region18: #{tpu_custom_call.1} parent=0 // pred_check
    _
  $region19: #{tpu_custom_call.1} parent=0 // pred_check_branch
    %20 = sbr.rel (0) target = $region21
  $region20: #{tpu_custom_call.1} parent=0 // pred_region
    _
  $region21: #{tpu_custom_call.1} parent=0 // pred_fallthru
    _
  %v21 = vld [vmem:[%s0] sm:$0xff]
  %v22 = vld [vmem:[%s0 + $0x8] sm:$0xff]
  %v23 = vld [vmem:[%s1] sm:$0xff]
  %v24 = vld [vmem:[%s1 + $0x8] sm:$0xff]
  %v25 = vld [vmem:[%s1 + $0x10] sm:$0xff]
  %v26 = vld [vmem:[%s1 + $0x18] sm:$0xff]
  %v27 = vld [vmem:[%s1 + $0x20] sm:$0xff]
  %v28 = vld [vmem:[%s1 + $0x28] sm:$0xff]
  %v29 = vld [vmem:[%s1 + $0x30] sm:$0xff]
  %v30 = vld [vmem:[%s1 + $0x38] sm:$0xff]
  %v31 = vld [vmem:[%s1 + $0x40] sm:$0xff]
  %v32 = vld [vmem:[%s1 + $0x48] sm:$0xff]
  %v33 = vld [vmem:[%s1 + $0x50] sm:$0xff]
  %v34 = vld [vmem:[%s1 + $0x58] sm:$0xff]
  %v35 = vld [vmem:[%s1 + $0x60] sm:$0xff]
  %v36 = vld [vmem:[%s1 + $0x68] sm:$0xff]
  %v37 = vld [vmem:[%s1 + $0x70] sm:$0xff]
  %v38 = vld [vmem:[%s1 + $0x78] sm:$0xff]
  %v39 = vld [vmem:[%s1 + $0x80] sm:$0xff]
  %v40 = vld [vmem:[%s1 + $0x88] sm:$0xff]
  %v41 = vld [vmem:[%s1 + $0x90] sm:$0xff]
  %v42 = vld [vmem:[%s1 + $0x98] sm:$0xff]
  %v43 = vld [vmem:[%s1 + $0xa0] sm:$0xff]
  %v44 = vld [vmem:[%s1 + $0xa8] sm:$0xff]
  %v45 = vld [vmem:[%s1 + $0xb0] sm:$0xff]
  %v46 = vld [vmem:[%s1 + $0xb8] sm:$0xff]
  %v47 = vld [vmem:[%s1 + $0xc0] sm:$0xff]
  %v48 = vld [vmem:[%s1 + $0xc8] sm:$0xff]
  %v49 = vld [vmem:[%s1 + $0xd0] sm:$0xff]
  %v50 = vld [vmem:[%s1 + $0xd8] sm:$0xff]
  %v51 = vld [vmem:[%s1 + $0xe0] sm:$0xff]
  %v52 = vld [vmem:[%s1 + $0xe8] sm:$0xff]
  %v53 = vld [vmem:[%s1 + $0xf0] sm:$0xff]
  %v54 = vld [vmem:[%s1 + $0xf8] sm:$0xff]
  %v55 = vld [vmem:[%s2] sm:$0x1]
  %v57 = vperm.slane %v55, 0
  %59 = vmatpush.msra.mxu0 %v38
  %60 = vmatpush.msra.mxu0 %v37
  %61 = vmatpush.msra.mxu0 %v36
  %62 = vmatpush.msra.mxu0 %v35
  %63 = vmatpush.msra.mxu0 %v34
  %64 = vmatpush.msra.mxu0 %v33
  %65 = vmatpush.msra.mxu0 %v32
  %66 = vmatpush.msra.mxu0 %v31
  %67 = vmatpush.msra.mxu0 %v30
  %68 = vmatpush.msra.mxu0 %v29
  %69 = vmatpush.msra.mxu0 %v28
  %70 = vmatpush.msra.mxu0 %v27
  %71 = vmatpush.msra.mxu0 %v26
  %72 = vmatpush.msra.mxu0 %v25
  %73 = vmatpush.msra.mxu0 %v24
  %74 = vmatpush.msra.mxu0 %v23
  %75 = vmatmul.f32.gmra.mxu0 %v21
  %v76 = vpop.f32.mrf.mxu0
  %v77 = vadd.f32 %v57, %v76
  %78 = vdwg.mxu0
  %79 = vmatpush.msra.mxu0 %v54
  %80 = vmatpush.msra.mxu0 %v53
  %81 = vmatpush.msra.mxu0 %v52
  %82 = vmatpush.msra.mxu0 %v51
  %83 = vmatpush.msra.mxu0 %v50
  %84 = vmatpush.msra.mxu0 %v49
  %85 = vmatpush.msra.mxu0 %v48
  %86 = vmatpush.msra.mxu0 %v47
  %87 = vmatpush.msra.mxu0 %v46
  %88 = vmatpush.msra.mxu0 %v45
  %89 = vmatpush.msra.mxu0 %v44
  %90 = vmatpush.msra.mxu0 %v43
  %91 = vmatpush.msra.mxu0 %v42
  %92 = vmatpush.msra.mxu0 %v41
  %93 = vmatpush.msra.mxu0 %v40
  %94 = vmatpush.msra.mxu0 %v39
  %95 = vmatmul.f32.gmra.mxu0 %v22
  %v96 = vpop.f32.mrf.mxu0
  %v97 = vadd.f32 %v77, %v96
  %98 = vdwg.mxu0
  %v99 = vmax.f32 %v97, 0.0
  %v100 = vld [vmem:[%s3] sm:$0x1]
  %v102 = vperm.slane %v100, 0
  %v104 = vmul.f32 %v99, %v102
  %vm105 = vcmask 261120
  %v106 = vsel %vm105, %v104, 0.0
  %107 = vadd.xlane.f32.xlu0 %v106
  %v108 = vpop.xlane.xlu0 %107
  %s109 = sld [smem:[#allocation2]]
  %v110 = vstv %s109
  %v111 = vadd.f32 %v108, %v110
  %vm112 = vcmask 7168
  %113 = vst.msk [vmem:[%s5] sm:$0xff] %vm112, %v111
  // Predicated region
  $region22: #{tpu_custom_call.1} parent=0 // pred_check
    _
  $region23: #{tpu_custom_call.1} parent=0 // pred_check_branch
    %115 = sbr.rel (0) target = $region25
  $region24: #{tpu_custom_call.1} parent=0 // pred_region
    _
  $region25: #{tpu_custom_call.1} parent=0 // pred_fallthru
    _
  // Predicated region
  $region26: #{tpu_custom_call.1} parent=0 // pred_check
    _
  $region27: #{tpu_custom_call.1} parent=0 // pred_check_branch
    %117 = sbr.rel (0) target = $region29
  $region28: #{tpu_custom_call.1} parent=0 // pred_region
    _
  $region29: #{tpu_custom_call.1} parent=0 // pred_fallthru
    _

</llo_original>
